<compile_context>
chip_gen: v7x
topology: tpu7x:2x2x1
jax: 0.10.0
libtpu: 0.0.40
codegen_flags: <defaults>
</compile_context>

<pallas_src>
import jax
import jax.numpy as jnp
from jax.experimental import pallas as pl
from jax.experimental.pallas import tpu as pltpu


def fa_edge_kernel(sd_ref, ss_ref, dd_ref, e_ref):
    # sd_ref : [TR, 128]  gate score contribution of the dst node (bias folded)
    # ss_ref : [TR, 128]  gate score contribution of the src node
    # dd_ref : [TR, 128]  deg[dst] * deg[src] per edge
    # e_ref  : [TR, 128]  output edge weights
    t = jnp.tanh(sd_ref[...] + ss_ref[...])        # EUP
    e_ref[...] = (0.3 + t * dd_ref[...]).astype(e_ref.dtype)   # VPU


def fa_layer_forward(node_feats, src_ids, dst_ids, gate_weight, gate_bias,
                     *, edge_tile=2048):
    """FALayer.forward: returns g.edata['e'] with shape [E, 1] (f32)."""
    N, D = node_feats.shape
    E = src_ids.shape[0]

    assert edge_tile % 128 == 0 and (edge_tile // 128) % 8 == 0, \
        "edge_tile must be a multiple of 1024 (8 sublanes x 128 lanes)"

    # --- plain-JAX glue: degrees + per-node gate scores ----------------------
    feats32 = node_feats.astype(jnp.float32)
    w = gate_weight.astype(jnp.float32)                          # [1, 2D]
    w_dst = w[0, :D]                                             # [D]
    w_src = w[0, D:]                                             # [D]
    b = gate_bias.astype(jnp.float32)[0]

    # in_degrees(): number of edges whose destination is the node.
    deg = jnp.zeros((N,), jnp.float32).at[dst_ids].add(1.0)      # [N]

    # Per-node gate scores (tiny [N,D]@[D] mat-vecs); bias folded into dst half.
    s_dst = feats32 @ w_dst + b                                  # [N]
    s_src = feats32 @ w_src                                      # [N]

    # Per-edge scalar gathers (only [E]-sized streams, not [E, D]).
    sd_e = jnp.take(s_dst, dst_ids)                              # [E]
    ss_e = jnp.take(s_src, src_ids)                              # [E]
    dd_e = jnp.take(deg, dst_ids) * jnp.take(deg, src_ids)       # [E]

    # --- lane-dense padding / reshape: [E] -> [E_pad/128, 128] ---------------
    n_tiles = pl.cdiv(E, edge_tile)
    E_pad = n_tiles * edge_tile
    pad = E_pad - E

    def to_slab(x):
        return jnp.pad(x, (0, pad)).reshape(E_pad // 128, 128)

    sd_s, ss_s, dd_s = to_slab(sd_e), to_slab(ss_e), to_slab(dd_e)

    rows_per_tile = edge_tile // 128
    slab_spec = pl.BlockSpec((rows_per_tile, 128), lambda i: (i, 0))

    e_slab = pl.pallas_call(
        fa_edge_kernel,
        out_shape=jax.ShapeDtypeStruct((E_pad // 128, 128), jnp.float32),
        grid_spec=pltpu.PrefetchScalarGridSpec(
            num_scalar_prefetch=0,
            grid=(n_tiles,),
            in_specs=[slab_spec, slab_spec, slab_spec],
            out_specs=slab_spec,
        ),
        compiler_params=pltpu.CompilerParams(
            dimension_semantics=("parallel",)),
    )(sd_s, ss_s, dd_s)

    # Back to the module's [E, 1] output layout.
    return e_slab.reshape(-1)[:E][:, None]


def fa_layer_reference(node_feats, src_ids, dst_ids, gate_weight, gate_bias):
    """Pure-JAX reference of FALayer.forward (eval-mode dropout)."""
    N, D = node_feats.shape
    deg = jnp.zeros((N,), jnp.float32).at[dst_ids].add(1.0)
    h2 = jnp.concatenate([node_feats[dst_ids], node_feats[src_ids]], axis=1)
    t = jnp.tanh(h2 @ gate_weight.T + gate_bias).squeeze()
    e = 0.3 + t * deg[dst_ids] * deg[src_ids]
    return e[:, None]


if __name__ == "__main__":
    key = jax.random.PRNGKey(0)
    k_feat, k_src, k_dst, k_w, k_b = jax.random.split(key, 5)

    N = 16        # number of nodes
    D = 32        # in_dim
    E = 64        # number of edges

    node_feats = jax.random.normal(k_feat, (N, D), dtype=jnp.float32)
    src_ids = jax.random.randint(k_src, (E,), 0, N, dtype=jnp.int32)
    dst_ids = jax.random.randint(k_dst, (E,), 0, N, dtype=jnp.int32)

    # gate = nn.Linear(2*D, 1) with xavier_normal_(gain=1.414) on the weight.
    gain = 1.414
    xavier_std = gain * (2.0 / (2 * D + 1)) ** 0.5
    gate_weight = xavier_std * jax.random.normal(k_w, (1, 2 * D), dtype=jnp.float32)
    bound = 1.0 / (2 * D) ** 0.5
    gate_bias = jax.random.uniform(k_b, (1,), dtype=jnp.float32,
                                   minval=-bound, maxval=bound)

    e_kernel = fa_layer_forward(node_feats, src_ids, dst_ids,
                                gate_weight, gate_bias)
    jax.block_until_ready(e_kernel)

    e_ref = fa_layer_reference(node_feats, src_ids, dst_ids,
                               gate_weight, gate_bias)
    assert e_kernel.shape == (E, 1)
    assert jnp.allclose(e_kernel, e_ref, atol=1e-5, rtol=1e-5)

    print("KERNEL_OK")
</pallas_src>

<mosaic_0001>
module attributes {stable_mosaic.version = 11 : i64} {
  func.func @fa_edge_kernel(%arg0: i32, %arg1: memref<16x128xf32, #tpu.memory_space<vmem>>, %arg2: memref<16x128xf32, #tpu.memory_space<vmem>>, %arg3: memref<16x128xf32, #tpu.memory_space<vmem>>, %arg4: memref<16x128xf32, #tpu.memory_space<vmem>>) attributes {dimension_semantics = [#tpu.dimension_semantics<parallel>], iteration_bounds = array<i64: 1>, scalar_prefetch = 0 : i64, scratch_operands = 0 : i64, tpu.core_type = #tpu.core_type<tc>, window_params = [{transform_indices = @transform_0, window_bounds = array<i64: 16, 128>}, {transform_indices = @transform_1, window_bounds = array<i64: 16, 128>}, {transform_indices = @transform_2, window_bounds = array<i64: 16, 128>}, {transform_indices = @transform_3, window_bounds = array<i64: 16, 128>}]} {
    %c0 = arith.constant 0 : index
    %c0_0 = arith.constant 0 : index
    %0 = vector.load %arg1[%c0, %c0_0] : memref<16x128xf32, #tpu.memory_space<vmem>>, vector<16x128xf32>
    %c0_1 = arith.constant 0 : index
    %c0_2 = arith.constant 0 : index
    %1 = vector.load %arg2[%c0_1, %c0_2] : memref<16x128xf32, #tpu.memory_space<vmem>>, vector<16x128xf32>
    %2 = arith.addf %0, %1 : vector<16x128xf32>
    %3 = math.tanh %2 : vector<16x128xf32>
    %c0_3 = arith.constant 0 : index
    %c0_4 = arith.constant 0 : index
    %4 = vector.load %arg3[%c0_3, %c0_4] : memref<16x128xf32, #tpu.memory_space<vmem>>, vector<16x128xf32>
    %5 = arith.mulf %3, %4 : vector<16x128xf32>
    %cst = arith.constant 3.000000e-01 : f32
    %6 = vector.broadcast %cst : f32 to vector<16x128xf32>
    %7 = arith.addf %6, %5 : vector<16x128xf32>
    %c0_5 = arith.constant 0 : index
    %c0_6 = arith.constant 0 : index
    %8 = vector.load %arg4[%c0_5, %c0_6] : memref<16x128xf32, #tpu.memory_space<vmem>>, vector<16x128xf32>
    tpu.vector_store %arg4[%c0_5, %c0_6], %7 {strides = array<i32>} : memref<16x128xf32, #tpu.memory_space<vmem>>, vector<16x128xf32>,
    return
  }
  func.func @transform_0(%arg0: i32) -> (i32, i32) {
    %c0_i32 = arith.constant 0 : i32
    %c0_i32_0 = arith.constant 0 : i32
    return %arg0, %c0_i32 : i32, i32
  }
  func.func @transform_1(%arg0: i32) -> (i32, i32) {
    %c0_i32 = arith.constant 0 : i32
    %c0_i32_0 = arith.constant 0 : i32
    return %arg0, %c0_i32 : i32, i32
  }
  func.func @transform_2(%arg0: i32) -> (i32, i32) {
    %c0_i32 = arith.constant 0 : i32
    %c0_i32_0 = arith.constant 0 : i32
    return %arg0, %c0_i32 : i32, i32
  }
  func.func @transform_3(%arg0: i32) -> (i32, i32) {
    %c0_i32 = arith.constant 0 : i32
    %c0_i32_0 = arith.constant 0 : i32
    return %arg0, %c0_i32 : i32, i32
  }
}

</mosaic_0001>

<llo_original>
// kernel: tpu_custom_call.1
$region0: #{tpu_custom_call.1}
  #allocation0 [shape = 'u32[]', space=smem, size = 0x4, offset = 0x4, fixed_abs, tag = 'smem constant byte address 0x4 - core index']
  #allocation1 [shape = 'u32[144,128]{1,0:T(1,128)}', space=vmem, size = 0x12000, scoped, tag = 'internal scratch']
  %s0 = inlined_call_operand.hbm [shape: f32[16,128], index: 0, kind: input, shape index: {}]
  %s1 = inlined_call_operand.hbm [shape: f32[16,128], index: 1, kind: input, shape index: {}]
  %s2 = inlined_call_operand.hbm [shape: f32[16,128], index: 2, kind: input, shape index: {}]
  %s3 = inlined_call_operand.hbm [shape: f32[16,128], index: 3, kind: output, shape index: {}]
  %s4 = sld [smem:[#allocation0]]
  $region34: #{tpu_custom_call.1} parent=0
    _
  %s6 = ssub.s32 1, %s4
  %s7 = scalar_select 0, %s6, %s4
  $region1: #{tpu_custom_call.1} parent=0
    #allocation2 [shape = 'u8[8192]{0}', space=vmem, size = 0x2000, scoped, tag = 'input window, operand 0, single buffered']
    #allocation3 [shape = 's32[1]{0}', space=sflag, size = 0x4, scoped, tag = 'scoped memory for tpu_custom_call.1']
    #allocation4 [shape = 's32[1]{0}', space=sflag, size = 0x4, scoped, tag = 'scoped memory for tpu_custom_call.1']
    #allocation5 [shape = 'u8[8192]{0}', space=vmem, size = 0x2000, scoped, tag = 'input window, operand 1, single buffered']
    #allocation6 [shape = 's32[1]{0}', space=sflag, size = 0x4, scoped, tag = 'scoped memory for tpu_custom_call.1']
    #allocation7 [shape = 'u8[8192]{0}', space=vmem, size = 0x2000, scoped, tag = 'input window, operand 2, single buffered']
    #allocation8 [shape = 'u8[8192]{0}', space=vmem, size = 0x2000, scoped, tag = 'output window, operand 0, single buffered']
    %8 = vsyncpa [#allocation3], 0
    %9 = vsyncpa [#allocation6], 0
    %10 = vsyncpa [#allocation4], 0
    // Predicated region
    $region2: #{tpu_custom_call.1} parent=1 // pred_check
      _
    $region3: #{tpu_custom_call.1} parent=1 // pred_check_branch
      %12 = sbr.rel (0) target = $region5
    $region4: #{tpu_custom_call.1} parent=1 // pred_region
      %s14 = ssub.s32 256, 256
      %15 = vsyncadd [#allocation3], %s14
      %s16 = sshll.u32 [#allocation2], 4
      %s17 = int_to_ptr.vmem [resolvable:$true] %s16
      %22 = dma.hbm_to_vmem [thread:$0]  %s0, 256, %s17, [#allocation3], 128, 128, 8
    $region5: #{tpu_custom_call.1} parent=1 // pred_fallthru
      _
    // Predicated region
    $region6: #{tpu_custom_call.1} parent=1 // pred_check
      _
    $region7: #{tpu_custom_call.1} parent=1 // pred_check_branch
      %24 = sbr.rel (0) target = $region9
    $region8: #{tpu_custom_call.1} parent=1 // pred_region
      %s26 = ssub.s32 256, 256
      %27 = vsyncadd [#allocation6], %s26
      %s28 = sshll.u32 [#allocation5], 4
      %s29 = int_to_ptr.vmem [resolvable:$true] %s28
      %34 = dma.hbm_to_vmem [thread:$0]  %s1, 256, %s29, [#allocation6], 128, 128, 8
    $region9: #{tpu_custom_call.1} parent=1 // pred_fallthru
      _
    // Predicated region
    $region10: #{tpu_custom_call.1} parent=1 // pred_check
      _
    $region11: #{tpu_custom_call.1} parent=1 // pred_check_branch
      %36 = sbr.rel (0) target = $region13
    $region12: #{tpu_custom_call.1} parent=1 // pred_region
      %s38 = ssub.s32 256, 256
      %39 = vsyncadd [#allocation6], %s38
      %s40 = sshll.u32 [#allocation7], 4
      %s41 = int_to_ptr.vmem [resolvable:$true] %s40
      %46 = dma.hbm_to_vmem [thread:$0]  %s2, 256, %s41, [#allocation6], 128, 128, 8
    $region13: #{tpu_custom_call.1} parent=1 // pred_fallthru
      _
    // Predicated region
    $region14: #{tpu_custom_call.1} parent=1 // pred_check
      _
    $region15: #{tpu_custom_call.1} parent=1 // pred_check_branch
      %48 = sbr.rel (0) target = $region17
    $region16: #{tpu_custom_call.1} parent=1 // pred_region
      %49 = dma.done [#allocation3], 256
    $region17: #{tpu_custom_call.1} parent=1 // pred_fallthru
      _
    // Predicated region
    $region18: #{tpu_custom_call.1} parent=1 // pred_check
      _
    $region19: #{tpu_custom_call.1} parent=1 // pred_check_branch
      %51 = sbr.rel (0) target = $region21
    $region20: #{tpu_custom_call.1} parent=1 // pred_region
      %52 = dma.done [#allocation6], 256
    $region21: #{tpu_custom_call.1} parent=1 // pred_fallthru
      _
    // Predicated region
    $region22: #{tpu_custom_call.1} parent=1 // pred_check
      _
    $region23: #{tpu_custom_call.1} parent=1 // pred_check_branch
      %54 = sbr.rel (0) target = $region25
    $region24: #{tpu_custom_call.1} parent=1 // pred_region
      %55 = dma.done [#allocation6], 256
    $region25: #{tpu_custom_call.1} parent=1 // pred_fallthru
      _
    %v56 = vld [vmem:[#allocation2] sm:$0xff]
    %v57 = vld [vmem:[#allocation2 + $0x8] sm:$0xff]
    %v58 = vld [vmem:[#allocation5] sm:$0xff]
    %v59 = vld [vmem:[#allocation5 + $0x8] sm:$0xff]
    %v60 = vadd.f32 %v56, %v58
    %v61 = vadd.f32 %v57, %v59
    %v62 = vtanh.pop %v60
    %v63 = vtanh.pop %v61
    %v64 = vld [vmem:[#allocation7] sm:$0xff]
    %v65 = vld [vmem:[#allocation7 + $0x8] sm:$0xff]
    %v66 = vmul.f32 %v62, %v64
    %v67 = vmul.f32 %v63, %v65
    %v68 = vadd.f32 %v66, 0.3
    %v69 = vadd.f32 %v67, 0.3
    %70 = vst [vmem:[#allocation8] sm:$0xff] %v68
    %71 = vst [vmem:[#allocation8 + $0x8] sm:$0xff] %v69
    // Predicated region
    $region26: #{tpu_custom_call.1} parent=1 // pred_check
      _
    $region27: #{tpu_custom_call.1} parent=1 // pred_check_branch
      %73 = sbr.rel (0) target = $region29
    $region28: #{tpu_custom_call.1} parent=1 // pred_region
      %s75 = ssub.s32 256, 256
      %76 = vsyncadd [#allocation4], %s75
      %s77 = sshll.u32 [#allocation8], 4
      %s78 = int_to_ptr.vmem [resolvable:$true] %s77
      %83 = dma.vmem_to_hbm [thread:$0]  %s78, 256, %s3, [#allocation4], 128, 128, 8
    $region29: #{tpu_custom_call.1} parent=1 // pred_fallthru
      _
    // Predicated region
    $region30: #{tpu_custom_call.1} parent=1 // pred_check
      _
    $region31: #{tpu_custom_call.1} parent=1 // pred_check_branch
      %85 = sbr.rel (0) target = $region33
    $region32: #{tpu_custom_call.1} parent=1 // pred_region
      %86 = dma.done [#allocation4], 256
    $region33: #{tpu_custom_call.1} parent=1 // pred_fallthru
      _
    %87 = vsyncpa [#allocation3], 1
    %88 = vsyncpa [#allocation6], 1
    %89 = vsyncpa [#allocation4], 1

</llo_original>
